<compile_context>
chip_gen: v7x
topology: tpu7x:2x2x1
jax: 0.10.0
libtpu: 0.0.40
codegen_flags: <defaults>
</compile_context>

<pallas_src>
import functools

import jax
import jax.numpy as jnp
from jax.experimental import pallas as pl
from jax.experimental.pallas import tpu as pltpu

H1 = 256  # layer1 output width
H2 = 128  # layer2 output width

# Packed small-parameter layout inside one (1, SMALL_LEN) fp32 row:
#   [B1_OFF : B1_OFF+H1)  -> b1  (256)
#   [B2_OFF : B2_OFF+H2)  -> b2  (128)
#   [W3_OFF : W3_OFF+H2)  -> w3 row (128)   (layer3 weight, stored (1,128))
#   [B3_OFF : B3_OFF+1 )  -> b3  (1)
B1_OFF = 0
B2_OFF = H1
W3_OFF = H1 + H2
B3_OFF = H1 + 2 * H2
SMALL_LEN = 640  # padded up to a lane multiple (>= 513)


def _round_up(x, m):
    return ((x + m - 1) // m) * m


def make_critic_kernel(S, A, K_PAD):
    PAD = K_PAD - (S + A)

    def kernel(state_ref, action_ref, w_ref, small_ref, o_ref, xin_ref):
        TB = state_ref.shape[0]

        # ---- Pack [state | action | 0-pad] into the bf16 layer-1 input scratch.
        # (written every grid step: with a "parallel" batch axis we cannot rely
        #  on a program_id==0 one-time init per core)
        xin_ref[:, 0:S] = state_ref[...].astype(jnp.bfloat16)
        xin_ref[:, S:S + A] = action_ref[...].astype(jnp.bfloat16)
        if PAD > 0:
            xin_ref[:, S + A:K_PAD] = jnp.zeros((TB, PAD), jnp.bfloat16)

        # Static slices of the packed small-parameter row (free).
        b1 = small_ref[:, B1_OFF:B1_OFF + H1]           # (1, 256) fp32
        b2 = small_ref[:, B2_OFF:B2_OFF + H2]           # (1, 128) fp32
        w3 = small_ref[:, W3_OFF:W3_OFF + H2]           # (1, 128) fp32
        b3 = small_ref[:, B3_OFF:B3_OFF + 1]            # (1, 1)   fp32

        # ---- Layer 1: one MXU pass against the padded W1 rows of the packed buffer.
        h1 = jnp.dot(xin_ref[...], w_ref[0:K_PAD, :],
                     preferred_element_type=jnp.float32) + b1
        h1 = jnp.maximum(h1, 0.0)                       # fp32 ReLU on VPU

        # ---- Layer 2: W2 stored lane-padded to (256, 256); keep the first 128 cols.
        h2f = jnp.dot(h1.astype(jnp.bfloat16), w_ref[K_PAD:K_PAD + H1, :],
                      preferred_element_type=jnp.float32)
        h2 = jnp.maximum(h2f[:, 0:H2] + b2, 0.0)

        # ---- Layer 3 (128 -> 1): VPU multiply + XLU lane reduce (no N=1 MXU pass).
        o_ref[...] = jnp.sum(h2 * w3, axis=-1, keepdims=True) + b3

    return kernel


def critic_forward(state, action, params, *, max_batch_tile=1024):
    """state: (B, S) fp32, action: (B, 1, A) fp32 -> (B, 1) fp32 Q-values."""
    w_packed, small = params
    B, S = state.shape
    A = action.shape[-1]
    K_PAD = w_packed.shape[0] - H1

    # Batch tile: whole batch for small B; otherwise a multiple of 8 (sublane
    # rule), <= 1024 so double-buffered tiles stay far under v5e/v7x VMEM limits.
    TB = B if B <= max_batch_tile else (max_batch_tile // 8) * 8
    grid = (pl.cdiv(B, TB),)

    kernel = make_critic_kernel(S, A, K_PAD)
    return pl.pallas_call(
        kernel,
        out_shape=jax.ShapeDtypeStruct((B, 1), jnp.float32),
        grid_spec=pltpu.PrefetchScalarGridSpec(
            num_scalar_prefetch=0,
            grid=grid,
            in_specs=[
                pl.BlockSpec((TB, S), lambda i: (i, 0)),          # state: batch-blocked
                pl.BlockSpec((TB, None, A), lambda i: (i, 0, 0)), # action: squeeze dim 1
                pl.BlockSpec((K_PAD + H1, H1), lambda i: (0, 0)), # packed weights: resident
                pl.BlockSpec((1, SMALL_LEN), lambda i: (0, 0)),   # packed small params
            ],
            out_specs=pl.BlockSpec((TB, 1), lambda i: (i, 0)),
            scratch_shapes=[pltpu.VMEM((TB, K_PAD), jnp.bfloat16)],
        ),
        compiler_params=pltpu.CompilerParams(
            dimension_semantics=("parallel",)),
    )(state, action, w_packed, small)


def init_params(key, state_dim, action_dim):
    """nn.Linear-style init (U[-1/sqrt(fan_in), 1/sqrt(fan_in)]).

    Returns (kernel_params, fp32_ref_params).
    kernel_params = (w_packed, small):
      w_packed: (K_PAD + 256, 256) bf16; rows [0:K_PAD) = W1 zero-padded on K,
                rows [K_PAD:K_PAD+256) = W2 zero-padded on its output (lane) dim.
      small:    one (1, 640) fp32 row packing b1 | b2 | w3-row | b3.
    """
    def linear_init(k, fan_in, fan_out):
        kw, kb = jax.random.split(k)
        bound = 1.0 / (fan_in ** 0.5)
        w = jax.random.uniform(kw, (fan_in, fan_out), jnp.float32, -bound, bound)
        b = jax.random.uniform(kb, (fan_out,), jnp.float32, -bound, bound)
        return w, b

    k1, k2, k3 = jax.random.split(key, 3)
    w1, b1 = linear_init(k1, state_dim + action_dim, H1)
    w2, b2 = linear_init(k2, H1, H2)
    w3, b3 = linear_init(k3, H2, 1)

    K_PAD = _round_up(state_dim + action_dim, 16)
    w_packed = jnp.zeros((K_PAD + H1, H1), jnp.float32)
    w_packed = w_packed.at[0:state_dim + action_dim, :].set(w1)
    w_packed = w_packed.at[K_PAD:K_PAD + H1, 0:H2].set(w2)
    w_packed = w_packed.astype(jnp.bfloat16)

    small = jnp.zeros((1, SMALL_LEN), jnp.float32)
    small = small.at[0, B1_OFF:B1_OFF + H1].set(b1)
    small = small.at[0, B2_OFF:B2_OFF + H2].set(b2)
    small = small.at[0, W3_OFF:W3_OFF + H2].set(w3[:, 0])
    small = small.at[0, B3_OFF].set(b3[0])

    fp32_ref = (w1, b1, w2, b2, w3, b3)
    return (w_packed, small), fp32_ref


if __name__ == "__main__":
    # Small, module-consistent shapes: batch=8, state_dim=16, action_dim=4.
    B, STATE_DIM, ACTION_DIM = 8, 16, 4

    key = jax.random.PRNGKey(0)
    k_state, k_action, k_params = jax.random.split(key, 3)

    state = jax.random.normal(k_state, (B, STATE_DIM), jnp.float32)
    action = jax.random.normal(k_action, (B, 1, ACTION_DIM), jnp.float32)
    params, fp32_ref = init_params(k_params, STATE_DIM, ACTION_DIM)

    q = critic_forward(state, action, params)
    jax.block_until_ready(q)

    # --- Reference 1: same numerics as the kernel (bf16 MXU operands, fp32 accum).
    w_packed, small = params
    K_PAD = w_packed.shape[0] - H1
    b1r = small[:, B1_OFF:B1_OFF + H1]
    b2r = small[:, B2_OFF:B2_OFF + H2]
    w3r = small[:, W3_OFF:W3_OFF + H2]
    b3r = small[:, B3_OFF:B3_OFF + 1]

    xin = jnp.zeros((B, K_PAD), jnp.bfloat16)
    xin = xin.at[:, 0:STATE_DIM].set(state.astype(jnp.bfloat16))
    xin = xin.at[:, STATE_DIM:STATE_DIM + ACTION_DIM].set(
        action[:, 0, :].astype(jnp.bfloat16))
    h1 = jnp.maximum(
        jnp.dot(xin, w_packed[0:K_PAD, :], preferred_element_type=jnp.float32) + b1r, 0.0)
    h2f = jnp.dot(h1.astype(jnp.bfloat16), w_packed[K_PAD:K_PAD + H1, :],
                  preferred_element_type=jnp.float32)
    h2 = jnp.maximum(h2f[:, 0:H2] + b2r, 0.0)
    q_ref_bf16 = jnp.sum(h2 * w3r, axis=-1, keepdims=True) + b3r

    # --- Reference 2: true fp32 math of the PyTorch module (loose tolerance:
    # the kernel stores MXU weights in bf16 on purpose).
    w1f, b1f, w2f, b2f, w3f, b3f = fp32_ref
    xf = jnp.concatenate([state, action[:, 0, :]], axis=1)
    h1f = jnp.maximum(xf @ w1f + b1f, 0.0)
    h2ff = jnp.maximum(h1f @ w2f + b2f, 0.0)
    q_ref_fp32 = h2ff @ w3f + b3f

    assert q.shape == (B, 1)
    assert jnp.allclose(q, q_ref_bf16, atol=2e-3, rtol=2e-3), \
        float(jnp.max(jnp.abs(q - q_ref_bf16)))
    assert jnp.allclose(q, q_ref_fp32, atol=1e-1, rtol=1e-1), \
        float(jnp.max(jnp.abs(q - q_ref_fp32)))

    print("KERNEL_OK")
</pallas_src>

<mosaic_0001>
module attributes {stable_mosaic.version = 11 : i64} {
  func.func @kernel(%arg0: i32, %arg1: memref<8x16xf32, #tpu.memory_space<vmem>>, %arg2: memref<8x1x4xf32, #tpu.memory_space<vmem>>, %arg3: memref<288x256xbf16, #tpu.memory_space<vmem>>, %arg4: memref<1x640xf32, #tpu.memory_space<vmem>>, %arg5: memref<8x1xf32, #tpu.memory_space<vmem>>, %arg6: memref<8x32xbf16, #tpu.memory_space<vmem>>) attributes {dimension_semantics = [#tpu.dimension_semantics<parallel>], iteration_bounds = array<i64: 1>, scalar_prefetch = 0 : i64, scratch_operands = 1 : i64, tpu.core_type = #tpu.core_type<tc>, window_params = [{transform_indices = @transform_0, window_bounds = array<i64: 8, 16>}, {transform_indices = @transform_1, window_bounds = array<i64: 8, 1, 4>}, {pipeline_mode = #tpu.pipeline_mode<synchronous>, transform_indices = @transform_2, window_bounds = array<i64: 288, 256>}, {pipeline_mode = #tpu.pipeline_mode<synchronous>, transform_indices = @transform_3, window_bounds = array<i64: 1, 640>}, {transform_indices = @transform_4, window_bounds = array<i64: 8, 1>}]} {
    %c0 = arith.constant 0 : index
    %c0_0 = arith.constant 0 : index
    %0 = vector.load %arg1[%c0, %c0_0] : memref<8x16xf32, #tpu.memory_space<vmem>>, vector<8x16xf32>
    %1 = arith.truncf %0 : vector<8x16xf32> to vector<8x16xbf16>
    %c0_1 = arith.constant 0 : index
    %c0_2 = arith.constant 0 : index
    %2 = vector.load %arg6[%c0_1, %c0_2] : memref<8x32xbf16, #tpu.memory_space<vmem>>, vector<8x16xbf16>
    tpu.vector_store %arg6[%c0_1, %c0_2], %1 {strides = array<i32>} : memref<8x32xbf16, #tpu.memory_space<vmem>>, vector<8x16xbf16>,
    %c0_3 = arith.constant 0 : index
    %c0_4 = arith.constant 0 : index
    %c0_5 = arith.constant 0 : index
    %3 = vector.load %arg2[%c0_3, %c0_4, %c0_5] : memref<8x1x4xf32, #tpu.memory_space<vmem>>, vector<8x1x4xf32>
    %4 = vector.shape_cast %3 : vector<8x1x4xf32> to vector<8x4xf32>
    %5 = arith.truncf %4 : vector<8x4xf32> to vector<8x4xbf16>
    %c0_6 = arith.constant 0 : index
    %c16 = arith.constant 16 : index
    %6 = vector.load %arg6[%c0_6, %c16] : memref<8x32xbf16, #tpu.memory_space<vmem>>, vector<8x4xbf16>
    tpu.vector_store %arg6[%c0_6, %c16], %5 {strides = array<i32>} : memref<8x32xbf16, #tpu.memory_space<vmem>>, vector<8x4xbf16>,
    %cst = arith.constant 0.000000e+00 : bf16
    %7 = vector.broadcast %cst : bf16 to vector<8x12xbf16>
    %c0_7 = arith.constant 0 : index
    %c20 = arith.constant 20 : index
    %8 = vector.load %arg6[%c0_7, %c20] : memref<8x32xbf16, #tpu.memory_space<vmem>>, vector<8x12xbf16>
    tpu.vector_store %arg6[%c0_7, %c20], %7 {strides = array<i32>} : memref<8x32xbf16, #tpu.memory_space<vmem>>, vector<8x12xbf16>,
    %c0_8 = arith.constant 0 : index
    %c0_9 = arith.constant 0 : index
    %9 = vector.load %arg4[%c0_8, %c0_9] : memref<1x640xf32, #tpu.memory_space<vmem>>, vector<1x256xf32>
    %c0_10 = arith.constant 0 : index
    %c256 = arith.constant 256 : index
    %10 = vector.load %arg4[%c0_10, %c256] : memref<1x640xf32, #tpu.memory_space<vmem>>, vector<1x128xf32>
    %c0_11 = arith.constant 0 : index
    %c384 = arith.constant 384 : index
    %11 = vector.load %arg4[%c0_11, %c384] : memref<1x640xf32, #tpu.memory_space<vmem>>, vector<1x128xf32>
    %c0_12 = arith.constant 0 : index
    %c512 = arith.constant 512 : index
    %12 = vector.load %arg4[%c0_12, %c512] : memref<1x640xf32, #tpu.memory_space<vmem>>, vector<1x1xf32>
    %c0_13 = arith.constant 0 : index
    %c0_14 = arith.constant 0 : index
    %13 = vector.load %arg6[%c0_13, %c0_14] : memref<8x32xbf16, #tpu.memory_space<vmem>>, vector<8x32xbf16>
    %c0_15 = arith.constant 0 : index
    %c0_16 = arith.constant 0 : index
    %14 = vector.load %arg3[%c0_15, %c0_16] : memref<288x256xbf16, #tpu.memory_space<vmem>>, vector<32x256xbf16>
    %cst_17 = arith.constant dense<0.000000e+00> : vector<8x256xf32>
    %15 = tpu.matmul %13, %14, %cst_17 {dimension_numbers = #tpu.dot_dimension_numbers<[1], [0], [0], [1], [0, 0, 1, 1], [], []>} : vector<8x32xbf16>, vector<32x256xbf16>, vector<8x256xf32> -> vector<8x256xf32>
    %16 = vector.broadcast %9 : vector<1x256xf32> to vector<8x256xf32>
    %17 = arith.addf %15, %16 : vector<8x256xf32>
    %cst_18 = arith.constant 0.000000e+00 : f32
    %18 = vector.broadcast %cst_18 : f32 to vector<8x256xf32>
    %19 = arith.maximumf %17, %18 : vector<8x256xf32>
    %20 = arith.truncf %19 : vector<8x256xf32> to vector<8x256xbf16>
    %c32 = arith.constant 32 : index
    %c0_19 = arith.constant 0 : index
    %21 = vector.load %arg3[%c32, %c0_19] : memref<288x256xbf16, #tpu.memory_space<vmem>>, vector<256x256xbf16>
    %cst_20 = arith.constant dense<0.000000e+00> : vector<8x256xf32>
    %22 = tpu.matmul %20, %21, %cst_20 {dimension_numbers = #tpu.dot_dimension_numbers<[1], [0], [0], [1], [0, 0, 1, 1], [], []>} : vector<8x256xbf16>, vector<256x256xbf16>, vector<8x256xf32> -> vector<8x256xf32>
    %23 = vector.extract_strided_slice %22 {offsets = [0, 0], sizes = [8, 128], strides = [1, 1]} : vector<8x256xf32> to vector<8x128xf32>
    %24 = vector.broadcast %10 : vector<1x128xf32> to vector<8x128xf32>
    %25 = arith.addf %23, %24 : vector<8x128xf32>
    %cst_21 = arith.constant 0.000000e+00 : f32
    %26 = vector.broadcast %cst_21 : f32 to vector<8x128xf32>
    %27 = arith.maximumf %25, %26 : vector<8x128xf32>
    %28 = vector.broadcast %11 : vector<1x128xf32> to vector<8x128xf32>
    %29 = arith.mulf %27, %28 : vector<8x128xf32>
    %cst_22 = arith.constant dense<0.000000e+00> : vector<8xf32>
    %30 = vector.multi_reduction <add>, %29, %cst_22 [1] : vector<8x128xf32> to vector<8xf32>
    %31 = vector.shape_cast %30 : vector<8xf32> to vector<8x1xf32>
    %32 = vector.broadcast %12 : vector<1x1xf32> to vector<8x1xf32>
    %33 = arith.addf %31, %32 : vector<8x1xf32>
    %c0_23 = arith.constant 0 : index
    %c0_24 = arith.constant 0 : index
    %34 = vector.load %arg5[%c0_23, %c0_24] : memref<8x1xf32, #tpu.memory_space<vmem>>, vector<8x1xf32>
    tpu.vector_store %arg5[%c0_23, %c0_24], %33 {strides = array<i32>} : memref<8x1xf32, #tpu.memory_space<vmem>>, vector<8x1xf32>,
    return
  }
  func.func @transform_0(%arg0: i32) -> (i32, i32) {
    %c0_i32 = arith.constant 0 : i32
    %c0_i32_0 = arith.constant 0 : i32
    return %arg0, %c0_i32 : i32, i32
  }
  func.func @transform_1(%arg0: i32) -> (i32, i32, i32) {
    %c0_i32 = arith.constant 0 : i32
    %c0_i32_0 = arith.constant 0 : i32
    %c0_i32_1 = arith.constant 0 : i32
    return %arg0, %c0_i32, %c0_i32_0 : i32, i32, i32
  }
  func.func @transform_2(%arg0: i32) -> (i32, i32) {
    %c0_i32 = arith.constant 0 : i32
    %c0_i32_0 = arith.constant 0 : i32
    %c0_i32_1 = arith.constant 0 : i32
    return %c0_i32, %c0_i32_0 : i32, i32
  }
  func.func @transform_3(%arg0: i32) -> (i32, i32) {
    %c0_i32 = arith.constant 0 : i32
    %c0_i32_0 = arith.constant 0 : i32
    %c0_i32_1 = arith.constant 0 : i32
    return %c0_i32, %c0_i32_0 : i32, i32
  }
  func.func @transform_4(%arg0: i32) -> (i32, i32) {
    %c0_i32 = arith.constant 0 : i32
    %c0_i32_0 = arith.constant 0 : i32
    return %arg0, %c0_i32 : i32, i32
  }
}

</mosaic_0001>

<llo_original>
// kernel: tpu_custom_call.1
$region0: #{tpu_custom_call.1}
  #allocation0 [shape = 'u32[]', space=smem, size = 0x4, offset = 0x4, fixed_abs, tag = 'smem constant byte address 0x4 - core index']
  #allocation1 [shape = 'u32[144,128]{1,0:T(1,128)}', space=vmem, size = 0x12000, scoped, tag = 'internal scratch']
  #allocation2 [shape = 'bf16[8,32]{1,0:T(8,128)(2,1)}', space=vmem, size = 0x800, scoped, tag = 'scratch operand']
  %s0 = inlined_call_operand.vmem [shape: f32[8,16], index: 0, kind: input, shape index: {}]
  %s1 = inlined_call_operand.vmem [shape: f32[8,1,4], index: 1, kind: input, shape index: {}]
  %s2 = inlined_call_operand.hbm [shape: bf16[288,256], index: 2, kind: input, shape index: {}]
  %s3 = inlined_call_operand.vmem [shape: f32[1,640], index: 3, kind: input, shape index: {}]
  %s4 = inlined_call_operand.vmem [shape: f32[8,1], index: 4, kind: output, shape index: {}]
  %s5 = sld [smem:[#allocation0]]
  $region30: #{tpu_custom_call.1} parent=0
    _
  %s7 = ssub.s32 1, %s5
  %s8 = scalar_select 0, %s7, %s5
  $region1: #{tpu_custom_call.1} parent=0
    #allocation3 [shape = 'u8[147456]{0}', space=vmem, size = 0x24000, scoped, tag = 'input window, operand 2, single buffered']
    #allocation4 [shape = 's32[1]{0}', space=sflag, size = 0x4, scoped, tag = 'scoped memory for tpu_custom_call.1']
    %9 = vsyncpa [#allocation4], 0
    // Predicated region
    $region2: #{tpu_custom_call.1} parent=1 // pred_check
      _
    $region3: #{tpu_custom_call.1} parent=1 // pred_check_branch
      %11 = sbr.rel (0) target = $region5
    $region4: #{tpu_custom_call.1} parent=1 // pred_region
      _
    $region5: #{tpu_custom_call.1} parent=1 // pred_fallthru
      _
    // Predicated region
    $region6: #{tpu_custom_call.1} parent=1 // pred_check
      _
    $region7: #{tpu_custom_call.1} parent=1 // pred_check_branch
      %13 = sbr.rel (0) target = $region9
    $region8: #{tpu_custom_call.1} parent=1 // pred_region
      _
    $region9: #{tpu_custom_call.1} parent=1 // pred_fallthru
      _
    // Predicated region
    $region10: #{tpu_custom_call.1} parent=1 // pred_check
      _
    $region11: #{tpu_custom_call.1} parent=1 // pred_check_branch
      %15 = sbr.rel (0) target = $region13
    $region12: #{tpu_custom_call.1} parent=1 // pred_region
      %s17 = ssub.s32 4608, 4608
      %18 = vsyncadd [#allocation4], %s17
      %s19 = sshll.u32 [#allocation3], 4
      %s20 = int_to_ptr.vmem [resolvable:$true] %s19
      %25 = dma.hbm_to_vmem [thread:$0]  %s2, 4608, %s20, [#allocation4], 128, 128, 8
    $region13: #{tpu_custom_call.1} parent=1 // pred_fallthru
      _
    // Predicated region
    $region14: #{tpu_custom_call.1} parent=1 // pred_check
      _
    $region15: #{tpu_custom_call.1} parent=1 // pred_check_branch
      %27 = sbr.rel (0) target = $region17
    $region16: #{tpu_custom_call.1} parent=1 // pred_region
      _
    $region17: #{tpu_custom_call.1} parent=1 // pred_fallthru
      _
    // Predicated region
    $region18: #{tpu_custom_call.1} parent=1 // pred_check
      _
    $region19: #{tpu_custom_call.1} parent=1 // pred_check_branch
      %29 = sbr.rel (0) target = $region21
    $region20: #{tpu_custom_call.1} parent=1 // pred_region
      %30 = dma.done [#allocation4], 4608
    $region21: #{tpu_custom_call.1} parent=1 // pred_fallthru
      _
    %v32 = vld [vmem:[%s0] sm:$0xff]
    %v33 = vpack.c.bf16 %v32, %v32
    %vm34 = vcmask 125952
    %35 = vst.msk [vmem:[#allocation2] sm:$0xf] %vm34, %v33
    %v36 = vld [vmem:[%s1] sm:$0x1]
    %v37 = vld [vmem:[%s1 + $0x1] sm:$0x1]
    %v38 = vld [vmem:[%s1 + $0x2] sm:$0x1]
    %v39 = vld [vmem:[%s1 + $0x3] sm:$0x1]
    %v40 = vld [vmem:[%s1 + $0x4] sm:$0x1]
    %v41 = vld [vmem:[%s1 + $0x5] sm:$0x1]
    %v42 = vld [vmem:[%s1 + $0x6] sm:$0x1]
    %v43 = vld [vmem:[%s1 + $0x7] sm:$0x1]
    %v44 = vpack.c.bf16 %v36, %v36
    %v45 = vpack.c.bf16 %v37, %v37
    %v46 = vpack.c.bf16 %v38, %v38
    %v47 = vpack.c.bf16 %v39, %v39
    %v48 = vpack.c.bf16 %v40, %v40
    %v49 = vpack.c.bf16 %v41, %v41
    %v50 = vpack.c.bf16 %v42, %v42
    %v51 = vpack.c.bf16 %v43, %v43
    %v60 = vunpack.c.l.b16 %v44
    %v61 = vunpack.c.l.b16 %v45
    %v62 = vunpack.c.l.b16 %v46
    %v63 = vunpack.c.l.b16 %v47
    %v64 = vunpack.c.l.b16 %v48
    %v65 = vunpack.c.l.b16 %v49
    %v66 = vunpack.c.l.b16 %v50
    %v67 = vunpack.c.l.b16 %v51
    %v68 = vpack.c.b16 %v60, %v60
    %v69 = vpack.c.b16 %v61, %v61
    %v70 = vpack.c.b16 %v62, %v62
    %v71 = vpack.c.b16 %v63, %v63
    %v72 = vpack.c.b16 %v64, %v64
    %v73 = vpack.c.b16 %v65, %v65
    %v74 = vpack.c.b16 %v66, %v66
    %v75 = vpack.c.b16 %v67, %v67
    %v76 = vunpack.c.l.b16 %v68
    %v77 = vunpack.c.l.b16 %v69
    %v78 = vunpack.c.l.b16 %v70
    %v79 = vunpack.c.l.b16 %v71
    %v80 = vunpack.c.l.b16 %v72
    %v81 = vunpack.c.l.b16 %v73
    %v82 = vunpack.c.l.b16 %v74
    %v83 = vunpack.c.l.b16 %v75
    %v84 = vrot.slane %v77, 7
    %vm85 = vcmask 1041409
    %v86 = vsel %vm85, %v84, %v76
    %v87 = vrot.slane %v78, 6
    %vm88 = vcmask 1042434
    %v89 = vsel %vm88, %v87, %v86
    %v90 = vrot.slane %v79, 5
    %vm91 = vcmask 1043459
    %v92 = vsel %vm91, %v90, %v89
    %v93 = vrot.slane %v80, 4
    %vm94 = vcmask 1044484
    %v95 = vsel %vm94, %v93, %v92
    %v96 = vrot.slane %v81, 3
    %vm97 = vcmask 1045509
    %v98 = vsel %vm97, %v96, %v95
    %v99 = vrot.slane %v82, 2
    %vm100 = vcmask 1046534
    %v101 = vsel %vm100, %v99, %v98
    %v102 = vrot.slane %v83, 1
    %vm103 = vcmask 1047559
    %v104 = vsel %vm103, %v102, %v101
    %v105 = vpack.c.b16 %v104, %v104
    %106 = vrot.lane.b32.xlu0 %v105, 16
    %v107 = vpop.permute.xlu0 %106
    %vm109 = vcmask 158848
    %110 = vst.msk [vmem:[#allocation2] sm:$0xf] %vm109, %v107
    %vm111 = vcmask 257184
    %112 = vst.msk [vmem:[#allocation2] sm:$0xf] %vm111, 0
    %v113 = vld [vmem:[%s3] sm:$0x3]
    %v114 = vld [vmem:[%s3 + $0x2] sm:$0x1]
    %v115 = vld [vmem:[%s3 + $0x3] sm:$0x1]
    %v116 = vld [vmem:[%s3 + $0x4] sm:$0x1]
    %v117 = vld [vmem:[#allocation2] sm:$0xf]
    %v118 = vld [vmem:[#allocation3] sm:$0xff]
    %v119 = vld [vmem:[#allocation3 + $0x8] sm:$0xff]
    %v120 = vld [vmem:[#allocation3 + $0x10] sm:$0xff]
    %v121 = vld [vmem:[#allocation3 + $0x18] sm:$0xff]
    %v123 = vlaneseq
    %v124 = vshrl.u32 %v123, 7
    %v125 = vsub.s32 0, %v124
    %v126 = vrot.slane %v113, %v125
    %v127 = vlaneseq
    %v128 = vshrl.u32 %v127, 7
    %v129 = vsub.s32 1, %v128
    %v130 = vrot.slane %v113, %v129
    %v137 = vunpack.c.l.b16 %v118
    %v138 = vunpack.c.h.b16 %v118
    %v139 = vunpack.c.l.b16 %v119
    %v140 = vunpack.c.h.b16 %v119
    %v141 = vunpack.c.l.b16 %v120
    %v142 = vunpack.c.h.b16 %v120
    %v143 = vunpack.c.l.b16 %v121
    %v144 = vunpack.c.h.b16 %v121
    %v145 = vpack.c.b16 %v139, %v137
    %v146 = vpack.c.b16 %v140, %v138
    %v147 = vpack.c.b16 %v143, %v141
    %v148 = vpack.c.b16 %v144, %v142
    %vm153 = vcmask 261120
    %v155 = vsel %vm153, %v117, 0
    %157 = vmatprep.subr.bf16.mxu0 %v146
    %158 = vmatpush1.bf16.msra.mxu0 %v145
    %159 = vmatprep.subr.bf16.mxu0 %v148
    %160 = vmatpush1.bf16.msra.mxu0 %v147
    %161 = vmatprep.subr.bf16.mxu0 0
    %162 = vmatpush1.bf16.msra.mxu0 0
    %163 = vmatprep.subr.bf16.mxu0 0
    %164 = vmatpush1.bf16.msra.mxu0 0
    %165 = vmatprep.subr.bf16.mxu0 0
    %166 = vmatpush1.bf16.msra.mxu0 0
    %167 = vmatprep.subr.bf16.mxu0 0
    %168 = vmatpush1.bf16.msra.mxu0 0
    %169 = vmatprep.subr.bf16.mxu0 0
    %170 = vmatpush1.bf16.msra.mxu0 0
    %171 = vmatprep.subr.bf16.mxu0 0
    %172 = vmatpush1.bf16.msra.mxu0 0
    %173 = vmatprep.subr.bf16.mxu0 0
    %174 = vmatpush1.bf16.msra.mxu0 0
    %175 = vmatprep.subr.bf16.mxu0 0
    %176 = vmatpush1.bf16.msra.mxu0 0
    %177 = vmatprep.subr.bf16.mxu0 0
    %178 = vmatpush1.bf16.msra.mxu0 0
    %179 = vmatprep.subr.bf16.mxu0 0
    %180 = vmatpush1.bf16.msra.mxu0 0
    %181 = vmatprep.subr.bf16.mxu0 0
    %182 = vmatpush1.bf16.msra.mxu0 0
    %183 = vmatprep.subr.bf16.mxu0 0
    %184 = vmatpush1.bf16.msra.mxu0 0
    %185 = vmatprep.subr.bf16.mxu0 0
    %186 = vmatpush1.bf16.msra.mxu0 0
    %187 = vmatprep.subr.bf16.mxu0 0
    %188 = vmatpush1.bf16.msra.mxu0 0
    %189 = vmatprep.mubr.bf16.mxu0 0
    %190 = vmatmul.mubr.bf16.gmra.mrb[0].mxu0 %v155
    %v191 = vpop.f32.mrb[0].mxu0
    %v192 = vadd.f32 %v126, %v191
    %v193 = vpop.f32.mrb[0].mxu0
    %v194 = vadd.f32 %v130, %v193
    %v195 = vpop.f32.mrb[0].mxu0
    %v196 = vpop.f32.mrb[0].mxu0
    %197 = vdwg.mxu0
    %v198 = vmax.f32 %v192, 0.0
    %v199 = vmax.f32 %v194, 0.0
    %v200 = vpack.c.bf16 %v198, %v198
    %v201 = vpack.c.bf16 %v199, %v199
    %v202 = vld [vmem:[#allocation3 + $0x20] sm:$0xff]
    %v203 = vld [vmem:[#allocation3 + $0x28] sm:$0xff]
    %v204 = vld [vmem:[#allocation3 + $0x30] sm:$0xff]
    %v205 = vld [vmem:[#allocation3 + $0x38] sm:$0xff]
    %v206 = vld [vmem:[#allocation3 + $0x40] sm:$0xff]
    %v207 = vld [vmem:[#allocation3 + $0x48] sm:$0xff]
    %v208 = vld [vmem:[#allocation3 + $0x50] sm:$0xff]
    %v209 = vld [vmem:[#allocation3 + $0x58] sm:$0xff]
    %v210 = vld [vmem:[#allocation3 + $0x60] sm:$0xff]
    %v211 = vld [vmem:[#allocation3 + $0x68] sm:$0xff]
    %v212 = vld [vmem:[#allocation3 + $0x70] sm:$0xff]
    %v213 = vld [vmem:[#allocation3 + $0x78] sm:$0xff]
    %v214 = vld [vmem:[#allocation3 + $0x80] sm:$0xff]
    %v215 = vld [vmem:[#allocation3 + $0x88] sm:$0xff]
    %v216 = vld [vmem:[#allocation3 + $0x90] sm:$0xff]
    %v217 = vld [vmem:[#allocation3 + $0x98] sm:$0xff]
    %v218 = vld [vmem:[#allocation3 + $0xa0] sm:$0xff]
    %v219 = vld [vmem:[#allocation3 + $0xa8] sm:$0xff]
    %v220 = vld [vmem:[#allocation3 + $0xb0] sm:$0xff]
    %v221 = vld [vmem:[#allocation3 + $0xb8] sm:$0xff]
    %v222 = vld [vmem:[#allocation3 + $0xc0] sm:$0xff]
    %v223 = vld [vmem:[#allocation3 + $0xc8] sm:$0xff]
    %v224 = vld [vmem:[#allocation3 + $0xd0] sm:$0xff]
    %v225 = vld [vmem:[#allocation3 + $0xd8] sm:$0xff]
    %v226 = vld [vmem:[#allocation3 + $0xe0] sm:$0xff]
    %v227 = vld [vmem:[#allocation3 + $0xe8] sm:$0xff]
    %v228 = vld [vmem:[#allocation3 + $0xf0] sm:$0xff]
    %v229 = vld [vmem:[#allocation3 + $0xf8] sm:$0xff]
    %v230 = vld [vmem:[#allocation3 + $0x100] sm:$0xff]
    %v231 = vld [vmem:[#allocation3 + $0x108] sm:$0xff]
    %v232 = vld [vmem:[#allocation3 + $0x110] sm:$0xff]
    %v233 = vld [vmem:[#allocation3 + $0x118] sm:$0xff]
    %v266 = vunpack.c.l.b16 %v202
    %v267 = vunpack.c.h.b16 %v202
    %v268 = vunpack.c.l.b16 %v203
    %v269 = vunpack.c.h.b16 %v203
    %v270 = vunpack.c.l.b16 %v204
    %v271 = vunpack.c.h.b16 %v204
    %v272 = vunpack.c.l.b16 %v205
    %v273 = vunpack.c.h.b16 %v205
    %v274 = vunpack.c.l.b16 %v206
    %v275 = vunpack.c.h.b16 %v206
    %v276 = vunpack.c.l.b16 %v207
    %v277 = vunpack.c.h.b16 %v207
    %v278 = vunpack.c.l.b16 %v208
    %v279 = vunpack.c.h.b16 %v208
    %v280 = vunpack.c.l.b16 %v209
    %v281 = vunpack.c.h.b16 %v209
    %v282 = vunpack.c.l.b16 %v210
    %v283 = vunpack.c.h.b16 %v210
    %v284 = vunpack.c.l.b16 %v211
    %v285 = vunpack.c.h.b16 %v211
    %v286 = vunpack.c.l.b16 %v212
    %v287 = vunpack.c.h.b16 %v212
    %v288 = vunpack.c.l.b16 %v213
    %v289 = vunpack.c.h.b16 %v213
    %v290 = vunpack.c.l.b16 %v214
    %v291 = vunpack.c.h.b16 %v214
    %v292 = vunpack.c.l.b16 %v215
    %v293 = vunpack.c.h.b16 %v215
    %v294 = vunpack.c.l.b16 %v216
    %v295 = vunpack.c.h.b16 %v216
    %v296 = vunpack.c.l.b16 %v217
    %v297 = vunpack.c.h.b16 %v217
    %v298 = vunpack.c.l.b16 %v218
    %v299 = vunpack.c.h.b16 %v218
    %v300 = vunpack.c.l.b16 %v219
    %v301 = vunpack.c.h.b16 %v219
    %v302 = vunpack.c.l.b16 %v220
    %v303 = vunpack.c.h.b16 %v220
    %v304 = vunpack.c.l.b16 %v221
    %v305 = vunpack.c.h.b16 %v221
    %v306 = vunpack.c.l.b16 %v222
    %v307 = vunpack.c.h.b16 %v222
    %v308 = vunpack.c.l.b16 %v223
    %v309 = vunpack.c.h.b16 %v223
    %v310 = vunpack.c.l.b16 %v224
    %v311 = vunpack.c.h.b16 %v224
    %v312 = vunpack.c.l.b16 %v225
    %v313 = vunpack.c.h.b16 %v225
    %v314 = vunpack.c.l.b16 %v226
    %v315 = vunpack.c.h.b16 %v226
    %v316 = vunpack.c.l.b16 %v227
    %v317 = vunpack.c.h.b16 %v227
    %v318 = vunpack.c.l.b16 %v228
    %v319 = vunpack.c.h.b16 %v228
    %v320 = vunpack.c.l.b16 %v229
    %v321 = vunpack.c.h.b16 %v229
    %v322 = vunpack.c.l.b16 %v230
    %v323 = vunpack.c.h.b16 %v230
    %v324 = vunpack.c.l.b16 %v231
    %v325 = vunpack.c.h.b16 %v231
    %v326 = vunpack.c.l.b16 %v232
    %v327 = vunpack.c.h.b16 %v232
    %v328 = vunpack.c.l.b16 %v233
    %v329 = vunpack.c.h.b16 %v233
    %v330 = vpack.c.b16 %v268, %v266
    %v331 = vpack.c.b16 %v269, %v267
    %v332 = vpack.c.b16 %v272, %v270
    %v333 = vpack.c.b16 %v273, %v271
    %v334 = vpack.c.b16 %v276, %v274
    %v335 = vpack.c.b16 %v277, %v275
    %v336 = vpack.c.b16 %v280, %v278
    %v337 = vpack.c.b16 %v281, %v279
    %v338 = vpack.c.b16 %v284, %v282
    %v339 = vpack.c.b16 %v285, %v283
    %v340 = vpack.c.b16 %v288, %v286
    %v341 = vpack.c.b16 %v289, %v287
    %v342 = vpack.c.b16 %v292, %v290
    %v343 = vpack.c.b16 %v293, %v291
    %v344 = vpack.c.b16 %v296, %v294
    %v345 = vpack.c.b16 %v297, %v295
    %v346 = vpack.c.b16 %v300, %v298
    %v347 = vpack.c.b16 %v301, %v299
    %v348 = vpack.c.b16 %v304, %v302
    %v349 = vpack.c.b16 %v305, %v303
    %v350 = vpack.c.b16 %v308, %v306
    %v351 = vpack.c.b16 %v309, %v307
    %v352 = vpack.c.b16 %v312, %v310
    %v353 = vpack.c.b16 %v313, %v311
    %v354 = vpack.c.b16 %v316, %v314
    %v355 = vpack.c.b16 %v317, %v315
    %v356 = vpack.c.b16 %v320, %v318
    %v357 = vpack.c.b16 %v321, %v319
    %v358 = vpack.c.b16 %v324, %v322
    %v359 = vpack.c.b16 %v325, %v323
    %v360 = vpack.c.b16 %v328, %v326
    %v361 = vpack.c.b16 %v329, %v327
    %394 = vmatprep.subr.bf16.mxu0 %v331
    %395 = vmatpush1.bf16.msra.mxu0 %v330
    %396 = vmatprep.subr.bf16.mxu0 %v333
    %397 = vmatpush1.bf16.msra.mxu0 %v332
    %398 = vmatprep.subr.bf16.mxu0 %v335
    %399 = vmatpush1.bf16.msra.mxu0 %v334
    %400 = vmatprep.subr.bf16.mxu0 %v337
    %401 = vmatpush1.bf16.msra.mxu0 %v336
    %402 = vmatprep.subr.bf16.mxu0 %v339
    %403 = vmatpush1.bf16.msra.mxu0 %v338
    %404 = vmatprep.subr.bf16.mxu0 %v341
    %405 = vmatpush1.bf16.msra.mxu0 %v340
    %406 = vmatprep.subr.bf16.mxu0 %v343
    %407 = vmatpush1.bf16.msra.mxu0 %v342
    %408 = vmatprep.subr.bf16.mxu0 %v345
    %409 = vmatpush1.bf16.msra.mxu0 %v344
    %410 = vmatprep.subr.bf16.mxu0 %v347
    %411 = vmatpush1.bf16.msra.mxu0 %v346
    %412 = vmatprep.subr.bf16.mxu0 %v349
    %413 = vmatpush1.bf16.msra.mxu0 %v348
    %414 = vmatprep.subr.bf16.mxu0 %v351
    %415 = vmatpush1.bf16.msra.mxu0 %v350
    %416 = vmatprep.subr.bf16.mxu0 %v353
    %417 = vmatpush1.bf16.msra.mxu0 %v352
    %418 = vmatprep.subr.bf16.mxu0 %v355
    %419 = vmatpush1.bf16.msra.mxu0 %v354
    %420 = vmatprep.subr.bf16.mxu0 %v357
    %421 = vmatpush1.bf16.msra.mxu0 %v356
    %422 = vmatprep.subr.bf16.mxu0 %v359
    %423 = vmatpush1.bf16.msra.mxu0 %v358
    %424 = vmatprep.subr.bf16.mxu0 %v361
    %425 = vmatpush1.bf16.msra.mxu0 %v360
    %426 = vmatprep.mubr.bf16.mxu0 %v201
    %427 = vmatmul.mubr.bf16.gmra.mrb[0].mxu0 %v200
    %v428 = vpop.f32.mrb[0].mxu0
    %v429 = vadd.f32 0.0, %v428
    %v430 = vpop.f32.mrb[0].mxu0
    %v431 = vpop.f32.mrb[0].mxu0
    %v432 = vpop.f32.mrb[0].mxu0
    %433 = vdwg.mxu0
    %v435 = vlaneseq
    %v436 = vshrl.u32 %v435, 7
    %v437 = vsub.s32 0, %v436
    %v438 = vrot.slane %v114, %v437
    %v440 = vadd.f32 %v429, %v438
    %v441 = vmax.f32 %v440, 0.0
    %v443 = vlaneseq
    %v444 = vshrl.u32 %v443, 7
    %v445 = vsub.s32 0, %v444
    %v446 = vrot.slane %v115, %v445
    %v448 = vmul.f32 %v441, %v446
    %449 = vadd.xlane.f32.xlu0 %v448
    %v450 = vpop.xlane.xlu0 %449
    %v452 = vlaneseq
    %v453 = vshrl.u32 %v452, 7
    %v454 = vsub.s32 0, %v453
    %v455 = vrot.slane %v116, %v454
    %v457 = vadd.f32 %v450, %v455
    %vm458 = vcmask 7168
    %459 = vst.msk [vmem:[%s4] sm:$0xff] %vm458, %v457
    // Predicated region
    $region22: #{tpu_custom_call.1} parent=1 // pred_check
      _
    $region23: #{tpu_custom_call.1} parent=1 // pred_check_branch
      %461 = sbr.rel (0) target = $region25
    $region24: #{tpu_custom_call.1} parent=1 // pred_region
      _
    $region25: #{tpu_custom_call.1} parent=1 // pred_fallthru
      _
    // Predicated region
    $region26: #{tpu_custom_call.1} parent=1 // pred_check
      _
    $region27: #{tpu_custom_call.1} parent=1 // pred_check_branch
      %463 = sbr.rel (0) target = $region29
    $region28: #{tpu_custom_call.1} parent=1 // pred_region
      _
    $region29: #{tpu_custom_call.1} parent=1 // pred_fallthru
      _
    %464 = vsyncpa [#allocation4], 1

</llo_original>
